<compile_context>
chip_gen: v5e
topology: v5e:2x2
jax: 0.10.0
libtpu: 0.0.40
codegen_flags: <defaults>
</compile_context>

<pallas_src>
import functools

import jax
import jax.numpy as jnp
from jax.experimental import pallas as pl
from jax.experimental.pallas import tpu as pltpu

LANE = 128      # lane (last-dim) granularity for padded feature dims
ROW_ALIGN = 16  # batch-block row granularity (satisfies f32 (8,·) and bf16 (16,·))


def _round_up(n, m):
    return (n + m - 1) // m * m


def _fused_mlp_kernel(*refs, n_layers):
    """refs = (x, w0, b0, ..., w_{L-1}, b_{L-1}, out); all VMEM-resident.

    h = ReLU(h @ w_i + b_i) for hidden layers, h @ w_last + b_last for the output
    layer.  Matmul operands use the weights' dtype (bf16 or f32); accumulation,
    bias add and ReLU are always f32.
    """
    x_ref, *wb_refs, o_ref = refs
    h = x_ref[...].astype(jnp.float32)
    for li in range(n_layers):
        w_ref = wb_refs[2 * li]              # (in_p, out_p), lane-dense
        b = wb_refs[2 * li + 1][...]         # (1, out_p), f32
        h = jnp.dot(h.astype(w_ref.dtype), w_ref[...],
                    preferred_element_type=jnp.float32) + b
        if li != n_layers - 1:
            h = jnp.maximum(h, 0.0)          # ReLU on the f32 accumulator
    o_ref[...] = h.astype(o_ref.dtype)


def init_mlp_params(key, in_size, hidden_sizes, out_size, last_wscale=1.0,
                    dtype=jnp.float32):
    """LeCunNormal(scale)/zero-bias init matching init_chainer_default.

    Weights stored as (in, out) = transpose of PyTorch's (out, in), so y = x @ W + b
    matches PyTorch's y = x @ W_pt.T + b exactly.
    """
    sizes = [in_size] + list(hidden_sizes) + [out_size]
    n_layers = len(sizes) - 1
    keys = jax.random.split(key, n_layers)
    params = []
    for li in range(n_layers):
        fan_in, fan_out = sizes[li], sizes[li + 1]
        scale = last_wscale if li == n_layers - 1 else 1.0
        std = scale * (1.0 / fan_in) ** 0.5
        w = std * jax.random.normal(keys[li], (fan_in, fan_out), dtype=dtype)
        b = jnp.zeros((fan_out,), dtype=dtype)
        params.append((w, b))
    return params


def pad_mlp_params(params, weight_dtype=jnp.bfloat16):
    """Prepare kernel-ready params.

    * First weight keeps its logical in-dim (x is passed unpadded); all output dims
      (and in-dims of later layers) are zero-padded to multiples of 128 so every
      activation / weight / output is lane-dense.
    * Weights are stored in `weight_dtype` (bf16 by default -> MXU native rate);
      biases stay f32 since the epilogue runs in f32.
    Zero-padded weight rows/cols and zero bias keep the padding mathematically inert.
    """
    padded = []
    for li, (w, b) in enumerate(params):
        fi, fo = w.shape
        fi_p = fi if li == 0 else _round_up(fi, LANE)
        fo_p = _round_up(fo, LANE)
        w_p = jnp.zeros((fi_p, fo_p), weight_dtype).at[:fi, :fo].set(
            w.astype(weight_dtype))
        b_p = jnp.zeros((1, fo_p), jnp.float32).at[0, :fo].set(
            b.astype(jnp.float32))
        padded.append((w_p, b_p))
    return padded


def mlp_forward(padded_params, x, out_size, *, batch_block=1024,
                no_grid_max_batch=64):
    """Fused-MLP forward. x: (batch, in_size) -> (batch, out_size)."""
    batch, in_size = x.shape
    assert padded_params[0][0].shape[0] == in_size, "first weight in-dim must match x"
    out_p = padded_params[-1][0].shape[1]
    n_layers = len(padded_params)
    flat = [a for wb in padded_params for a in wb]
    kernel = functools.partial(_fused_mlp_kernel, n_layers=n_layers)

    wb_bytes = sum(int(a.size) * a.dtype.itemsize for a in flat)
    max_feat = max(w.shape[1] for w, _ in padded_params)
    flops = 2 * batch * sum(w.shape[0] * w.shape[1] for w, _ in padded_params)
    io_bytes = (batch * in_size * x.dtype.itemsize + wb_bytes
                + batch * out_p * x.dtype.itemsize)
    cost = pl.CostEstimate(flops=flops, transcendentals=0, bytes_accessed=io_bytes)

    if batch <= no_grid_max_batch:
        # Tiny batch: no grid at all (no degenerate 1-step pipeline); everything is a
        # full-array VMEM-resident operand.
        vmem = pl.BlockSpec(memory_space=pltpu.MemorySpace.VMEM)
        y_p = pl.pallas_call(
            kernel,
            out_shape=jax.ShapeDtypeStruct((batch, out_p), x.dtype),
            in_specs=[vmem] * (1 + len(flat)),
            out_specs=vmem,
            cost_estimate=cost,
        )(x, *flat)
    else:
        # Batch-tiled "parallel" grid; always >= 2 steps so v7x's two TensorCores
        # both get work (parallel vs arbitrary is ~neutral on v5e/v6e).
        bb = min(_round_up(batch_block, ROW_ALIGN),
                 _round_up(pl.cdiv(batch, 2), ROW_ALIGN))
        grid = pl.cdiv(batch, bb)

        # VMEM budget: weights/biases (counted double-buffered even though their
        # index_map is constant), double-buffered x/out blocks, and ~2x the largest
        # f32 intermediate activation block (vreg spill space between layers).
        est = (2 * wb_bytes
               + 2 * bb * in_size * x.dtype.itemsize
               + 2 * bb * out_p * x.dtype.itemsize
               + 2 * bb * max_feat * 4)
        vmem_limit = int(min(64 * 1024 * 1024, max(32 * 1024 * 1024, 2 * est)))

        wb_specs = []
        for w, b in padded_params:
            wb_specs.append(pl.BlockSpec(w.shape, lambda i: (0, 0)))
            wb_specs.append(pl.BlockSpec(b.shape, lambda i: (0, 0)))

        y_p = pl.pallas_call(
            kernel,
            out_shape=jax.ShapeDtypeStruct((batch, out_p), x.dtype),
            grid=(grid,),
            # x block: full (unpadded) feature dim, so no wrapper-side jnp.pad and
            # no oversized input DMA.  Tail grid block rows beyond `batch` are
            # masked partial reads/writes; rows are independent, so this is safe.
            in_specs=[pl.BlockSpec((bb, in_size), lambda i: (i, 0))] + wb_specs,
            out_specs=pl.BlockSpec((bb, out_p), lambda i: (i, 0)),
            compiler_params=pltpu.CompilerParams(
                dimension_semantics=("parallel",),
                vmem_limit_bytes=vmem_limit),
            cost_estimate=cost,
        )(x, *flat)

    return y_p[:, :out_size]


def mlp_reference(params, x):
    h = x
    n_layers = len(params)
    for li, (w, b) in enumerate(params):
        h = h @ w + b
        if li != n_layers - 1:
            h = jnp.maximum(h, 0.0)
    return h


if __name__ == "__main__":
    key = jax.random.PRNGKey(0)
    k_p, k_x, k_x2 = jax.random.split(key, 3)

    batch = 8
    in_size = 32
    hidden_sizes = (64, 64)
    out_size = 16

    params = init_mlp_params(k_p, in_size, hidden_sizes, out_size, last_wscale=1.0)

    x = jax.random.normal(k_x, (batch, in_size), dtype=jnp.float32)
    x_big = jax.random.normal(k_x2, (500, in_size), dtype=jnp.float32)  # non-divisible batch

    fwd = jax.jit(functools.partial(mlp_forward, out_size=out_size))

    # ---- f32-weight "exact" mode: matches the reference to tight tolerance ----
    padded_f32 = pad_mlp_params(params, weight_dtype=jnp.float32)

    out = jax.block_until_ready(fwd(padded_f32, x))           # no-grid path
    ref = mlp_reference(params, x)
    assert out.shape == (batch, out_size)
    assert jnp.allclose(out, ref, atol=1e-5, rtol=1e-5), "small-batch mismatch"

    out_big = jax.block_until_ready(fwd(padded_f32, x_big))   # gridded path + tail block
    ref_big = mlp_reference(params, x_big)
    assert out_big.shape == (500, out_size)
    assert jnp.allclose(out_big, ref_big, atol=1e-5, rtol=1e-5), "big-batch mismatch"

    # ---- bf16-weight mode (MXU-native rate, f32 accumulate): loose tolerance ----
    padded_bf16 = pad_mlp_params(params, weight_dtype=jnp.bfloat16)
    out_bf = jax.block_until_ready(fwd(padded_bf16, x_big))
    assert out_bf.shape == (500, out_size)
    assert float(jnp.max(jnp.abs(out_bf - ref_big))) < 1e-1, "bf16-mode mismatch"

    print("KERNEL_OK")
</pallas_src>

<mosaic_0001>
module attributes {stable_mosaic.version = 11 : i64} {
  func.func @_fused_mlp_kernel(%arg0: memref<8x32xf32, #tpu.memory_space<vmem>>, %arg1: memref<32x128xf32, #tpu.memory_space<vmem>>, %arg2: memref<1x128xf32, #tpu.memory_space<vmem>>, %arg3: memref<128x128xf32, #tpu.memory_space<vmem>>, %arg4: memref<1x128xf32, #tpu.memory_space<vmem>>, %arg5: memref<128x128xf32, #tpu.memory_space<vmem>>, %arg6: memref<1x128xf32, #tpu.memory_space<vmem>>, %arg7: memref<8x128xf32, #tpu.memory_space<vmem>>) attributes {dimension_semantics = [], scalar_prefetch = 0 : i64, scratch_operands = 0 : i64, tpu.core_type = #tpu.core_type<tc>} {
    %c0 = arith.constant 0 : index
    %c0_0 = arith.constant 0 : index
    %0 = vector.load %arg0[%c0, %c0_0] : memref<8x32xf32, #tpu.memory_space<vmem>>, vector<8x32xf32>
    %c0_1 = arith.constant 0 : index
    %c0_2 = arith.constant 0 : index
    %1 = vector.load %arg2[%c0_1, %c0_2] : memref<1x128xf32, #tpu.memory_space<vmem>>, vector<1x128xf32>
    %c0_3 = arith.constant 0 : index
    %c0_4 = arith.constant 0 : index
    %2 = vector.load %arg1[%c0_3, %c0_4] : memref<32x128xf32, #tpu.memory_space<vmem>>, vector<32x128xf32>
    %cst = arith.constant dense<0.000000e+00> : vector<8x128xf32>
    %3 = tpu.matmul %0, %2, %cst {dimension_numbers = #tpu.dot_dimension_numbers<[1], [0], [0], [1], [0, 0, 1, 1], [], []>} : vector<8x32xf32>, vector<32x128xf32>, vector<8x128xf32> -> vector<8x128xf32>
    %4 = vector.broadcast %1 : vector<1x128xf32> to vector<8x128xf32>
    %5 = arith.addf %3, %4 : vector<8x128xf32>
    %cst_5 = arith.constant 0.000000e+00 : f32
    %6 = vector.broadcast %cst_5 : f32 to vector<8x128xf32>
    %7 = arith.maximumf %5, %6 : vector<8x128xf32>
    %c0_6 = arith.constant 0 : index
    %c0_7 = arith.constant 0 : index
    %8 = vector.load %arg4[%c0_6, %c0_7] : memref<1x128xf32, #tpu.memory_space<vmem>>, vector<1x128xf32>
    %c0_8 = arith.constant 0 : index
    %c0_9 = arith.constant 0 : index
    %9 = vector.load %arg3[%c0_8, %c0_9] : memref<128x128xf32, #tpu.memory_space<vmem>>, vector<128x128xf32>
    %cst_10 = arith.constant dense<0.000000e+00> : vector<8x128xf32>
    %10 = tpu.matmul %7, %9, %cst_10 {dimension_numbers = #tpu.dot_dimension_numbers<[1], [0], [0], [1], [0, 0, 1, 1], [], []>} : vector<8x128xf32>, vector<128x128xf32>, vector<8x128xf32> -> vector<8x128xf32>
    %11 = vector.broadcast %8 : vector<1x128xf32> to vector<8x128xf32>
    %12 = arith.addf %10, %11 : vector<8x128xf32>
    %cst_11 = arith.constant 0.000000e+00 : f32
    %13 = vector.broadcast %cst_11 : f32 to vector<8x128xf32>
    %14 = arith.maximumf %12, %13 : vector<8x128xf32>
    %c0_12 = arith.constant 0 : index
    %c0_13 = arith.constant 0 : index
    %15 = vector.load %arg6[%c0_12, %c0_13] : memref<1x128xf32, #tpu.memory_space<vmem>>, vector<1x128xf32>
    %c0_14 = arith.constant 0 : index
    %c0_15 = arith.constant 0 : index
    %16 = vector.load %arg5[%c0_14, %c0_15] : memref<128x128xf32, #tpu.memory_space<vmem>>, vector<128x128xf32>
    %cst_16 = arith.constant dense<0.000000e+00> : vector<8x128xf32>
    %17 = tpu.matmul %14, %16, %cst_16 {dimension_numbers = #tpu.dot_dimension_numbers<[1], [0], [0], [1], [0, 0, 1, 1], [], []>} : vector<8x128xf32>, vector<128x128xf32>, vector<8x128xf32> -> vector<8x128xf32>
    %18 = vector.broadcast %15 : vector<1x128xf32> to vector<8x128xf32>
    %19 = arith.addf %17, %18 : vector<8x128xf32>
    %c0_17 = arith.constant 0 : index
    %c0_18 = arith.constant 0 : index
    %20 = vector.load %arg7[%c0_17, %c0_18] : memref<8x128xf32, #tpu.memory_space<vmem>>, vector<8x128xf32>
    tpu.vector_store %arg7[%c0_17, %c0_18], %19 {strides = array<i32>} : memref<8x128xf32, #tpu.memory_space<vmem>>, vector<8x128xf32>,
    return
  }
}

</mosaic_0001>

<llo_original>
// kernel: mlp_forward.1
$region0: #{mlp_forward.1}
  #allocation0 [shape = 'u32[]', space=smem, size = 0x4, offset = 0x4, fixed_abs, tag = 'smem constant byte address 0x4 - core index']
  #allocation1 [shape = 'u32[72,128]{1,0:T(1,128)}', space=vmem, size = 0x9000, scoped, tag = 'internal scratch']
  %s0 = inlined_call_operand.hbm [shape: f32[8,32], index: 0, kind: input, shape index: {}]
  %s1 = inlined_call_operand.hbm [shape: f32[32,128], index: 1, kind: input, shape index: {}]
  %s2 = inlined_call_operand.hbm [shape: f32[1,128], index: 2, kind: input, shape index: {}]
  %s3 = inlined_call_operand.hbm [shape: f32[128,128], index: 3, kind: input, shape index: {}]
  %s4 = inlined_call_operand.vmem [shape: f32[1,128], index: 4, kind: input, shape index: {}]
  %s5 = inlined_call_operand.hbm [shape: f32[128,128], index: 5, kind: input, shape index: {}]
  %s6 = inlined_call_operand.vmem [shape: f32[1,128], index: 6, kind: input, shape index: {}]
  %s7 = inlined_call_operand.hbm [shape: f32[8,128], index: 7, kind: output, shape index: {}]
  %s8 = sld [smem:[#allocation0]]
  $region58: #{mlp_forward.1} parent=0
    _
  %s10 = ssub.s32 1, %s8
  %s11 = scalar_select 0, %s10, %s8
  $region1: #{mlp_forward.1} parent=0
    #allocation2 [shape = 'u8[4096]{0}', space=vmem, size = 0x1000, scoped, tag = 'input window, operand 0, single buffered']
    #allocation3 [shape = 's32[1]{0}', space=sflag, size = 0x4, scoped, tag = 'scoped memory for mlp_forward.1']
    #allocation4 [shape = 's32[1]{0}', space=sflag, size = 0x4, scoped, tag = 'scoped memory for mlp_forward.1']
    #allocation5 [shape = 'u8[16384]{0}', space=vmem, size = 0x4000, scoped, tag = 'input window, operand 1, single buffered']
    #allocation6 [shape = 's32[1]{0}', space=sflag, size = 0x4, scoped, tag = 'scoped memory for mlp_forward.1']
    #allocation7 [shape = 'u8[512]{0}', space=vmem, size = 0x400, scoped, tag = 'input window, operand 2, single buffered']
    #allocation8 [shape = 'u8[65536]{0}', space=vmem, size = 0x10000, scoped, tag = 'input window, operand 3, single buffered']
    #allocation9 [shape = 's32[1]{0}', space=sflag, size = 0x4, scoped, tag = 'scoped memory for mlp_forward.1']
    #allocation10 [shape = 'u8[65536]{0}', space=vmem, size = 0x10000, scoped, tag = 'input window, operand 5, single buffered']
    #allocation11 [shape = 'u8[4096]{0}', space=vmem, size = 0x1000, scoped, tag = 'output window, operand 0, single buffered']
    %12 = vsyncpa [#allocation3], 0
    %13 = vsyncpa [#allocation6], 0
    %14 = vsyncpa [#allocation9], 0
    %15 = vsyncpa [#allocation4], 0
    // Predicated region
    $region2: #{mlp_forward.1} parent=1 // pred_check
      _
    $region3: #{mlp_forward.1} parent=1 // pred_check_branch
      %17 = sbr.rel (0) target = $region5
    $region4: #{mlp_forward.1} parent=1 // pred_region
      %19 = vsyncadd [#allocation3], 0
      %s21 = sshll.u32 %s0, 4
      %s22 = int_to_ptr.hbm [resolvable:$true] %s21
      %s23 = sshll.u32 [#allocation2], 4
      %s24 = int_to_ptr.vmem [resolvable:$true] %s23
      %26 = dma.hbm_to_vmem [thread:$0]  %s22, 128, %s24, [#allocation3]
    $region5: #{mlp_forward.1} parent=1 // pred_fallthru
      _
    // Predicated region
    $region6: #{mlp_forward.1} parent=1 // pred_check
      _
    $region7: #{mlp_forward.1} parent=1 // pred_check_branch
      %28 = sbr.rel (0) target = $region9
    $region8: #{mlp_forward.1} parent=1 // pred_region
      %30 = vsyncadd [#allocation6], 0
      %s31 = sshll.u32 %s1, 4
      %s32 = int_to_ptr.hbm [resolvable:$true] %s31
      %s33 = sshll.u32 [#allocation5], 4
      %s34 = int_to_ptr.vmem [resolvable:$true] %s33
      %39 = dma.hbm_to_vmem [thread:$0]  %s32, 512, %s34, [#allocation6], 128, 128, 8
    $region9: #{mlp_forward.1} parent=1 // pred_fallthru
      _
    // Predicated region
    $region10: #{mlp_forward.1} parent=1 // pred_check
      _
    $region11: #{mlp_forward.1} parent=1 // pred_check_branch
      %41 = sbr.rel (0) target = $region13
    $region12: #{mlp_forward.1} parent=1 // pred_region
      %43 = vsyncadd [#allocation6], 0
      %s45 = sshll.u32 %s2, 4
      %s46 = int_to_ptr.hbm [resolvable:$true] %s45
      %s47 = sshll.u32 [#allocation7], 4
      %s48 = int_to_ptr.vmem [resolvable:$true] %s47
      %50 = dma.hbm_to_vmem [thread:$0]  %s46, 16, %s48, [#allocation6]
    $region13: #{mlp_forward.1} parent=1 // pred_fallthru
      _
    // Predicated region
    $region14: #{mlp_forward.1} parent=1 // pred_check
      _
    $region15: #{mlp_forward.1} parent=1 // pred_check_branch
      %52 = sbr.rel (0) target = $region17
    $region16: #{mlp_forward.1} parent=1 // pred_region
      %54 = vsyncadd [#allocation9], 0
      %s55 = sshll.u32 %s3, 4
      %s56 = int_to_ptr.hbm [resolvable:$true] %s55
      %s57 = sshll.u32 [#allocation8], 4
      %s58 = int_to_ptr.vmem [resolvable:$true] %s57
      %63 = dma.hbm_to_vmem [thread:$0]  %s56, 2048, %s58, [#allocation9], 128, 128, 8
    $region17: #{mlp_forward.1} parent=1 // pred_fallthru
      _
    // Predicated region
    $region18: #{mlp_forward.1} parent=1 // pred_check
      _
    $region19: #{mlp_forward.1} parent=1 // pred_check_branch
      %65 = sbr.rel (0) target = $region21
    $region20: #{mlp_forward.1} parent=1 // pred_region
      _
    $region21: #{mlp_forward.1} parent=1 // pred_fallthru
      _
    // Predicated region
    $region22: #{mlp_forward.1} parent=1 // pred_check
      _
    $region23: #{mlp_forward.1} parent=1 // pred_check_branch
      %67 = sbr.rel (0) target = $region25
    $region24: #{mlp_forward.1} parent=1 // pred_region
      %69 = vsyncadd [#allocation9], 0
      %s70 = sshll.u32 %s5, 4
      %s71 = int_to_ptr.hbm [resolvable:$true] %s70
      %s72 = sshll.u32 [#allocation10], 4
      %s73 = int_to_ptr.vmem [resolvable:$true] %s72
      %78 = dma.hbm_to_vmem [thread:$0]  %s71, 2048, %s73, [#allocation9], 128, 128, 8
    $region25: #{mlp_forward.1} parent=1 // pred_fallthru
      _
    // Predicated region
    $region26: #{mlp_forward.1} parent=1 // pred_check
      _
    $region27: #{mlp_forward.1} parent=1 // pred_check_branch
      %80 = sbr.rel (0) target = $region29
    $region28: #{mlp_forward.1} parent=1 // pred_region
      _
    $region29: #{mlp_forward.1} parent=1 // pred_fallthru
      _
    // Predicated region
    $region30: #{mlp_forward.1} parent=1 // pred_check
      _
    $region31: #{mlp_forward.1} parent=1 // pred_check_branch
      %82 = sbr.rel (0) target = $region33
    $region32: #{mlp_forward.1} parent=1 // pred_region
      %84 = dma.done [#allocation3], 128
    $region33: #{mlp_forward.1} parent=1 // pred_fallthru
      _
    // Predicated region
    $region34: #{mlp_forward.1} parent=1 // pred_check
      _
    $region35: #{mlp_forward.1} parent=1 // pred_check_branch
      %86 = sbr.rel (0) target = $region37
    $region36: #{mlp_forward.1} parent=1 // pred_region
      %88 = dma.done [#allocation6], 512
    $region37: #{mlp_forward.1} parent=1 // pred_fallthru
      _
    // Predicated region
    $region38: #{mlp_forward.1} parent=1 // pred_check
      _
    $region39: #{mlp_forward.1} parent=1 // pred_check_branch
      %90 = sbr.rel (0) target = $region41
    $region40: #{mlp_forward.1} parent=1 // pred_region
      %92 = dma.done [#allocation6], 16
    $region41: #{mlp_forward.1} parent=1 // pred_fallthru
      _
    // Predicated region
    $region42: #{mlp_forward.1} parent=1 // pred_check
      _
    $region43: #{mlp_forward.1} parent=1 // pred_check_branch
      %94 = sbr.rel (0) target = $region45
    $region44: #{mlp_forward.1} parent=1 // pred_region
      %96 = dma.done [#allocation9], 2048
    $region45: #{mlp_forward.1} parent=1 // pred_fallthru
      _
    // Predicated region
    $region46: #{mlp_forward.1} parent=1 // pred_check
      _
    $region47: #{mlp_forward.1} parent=1 // pred_check_branch
      %98 = sbr.rel (0) target = $region49
    $region48: #{mlp_forward.1} parent=1 // pred_region
      %100 = dma.done [#allocation9], 2048
    $region49: #{mlp_forward.1} parent=1 // pred_fallthru
      _
    %v101 = vld [vmem:[#allocation2] sm:$0xff]
    %v102 = vld [vmem:[#allocation7] sm:$0x1]
    %v103 = vld [vmem:[#allocation5] sm:$0xff]
    %v104 = vld [vmem:[#allocation5 + $0x8] sm:$0xff]
    %v105 = vld [vmem:[#allocation5 + $0x10] sm:$0xff]
    %v106 = vld [vmem:[#allocation5 + $0x18] sm:$0xff]
    %v108 = vperm.slane %v102, 0
    %vm110 = vcmask 261120
    %v112 = vsel %vm110, %v101, 0
    %114 = vmatpush.msra.mxu0 0.0
    %115 = vmatpush.msra.mxu0 0.0
    %116 = vmatpush.msra.mxu0 0.0
    %117 = vmatpush.msra.mxu0 0.0
    %118 = vmatpush.msra.mxu0 0.0
    %119 = vmatpush.msra.mxu0 0.0
    %120 = vmatpush.msra.mxu0 0.0
    %121 = vmatpush.msra.mxu0 0.0
    %122 = vmatpush.msra.mxu0 0.0
    %123 = vmatpush.msra.mxu0 0.0
    %124 = vmatpush.msra.mxu0 0.0
    %125 = vmatpush.msra.mxu0 0.0
    %126 = vmatpush.msra.mxu0 %v106
    %127 = vmatpush.msra.mxu0 %v105
    %128 = vmatpush.msra.mxu0 %v104
    %129 = vmatpush.msra.mxu0 %v103
    %130 = vmatmul.f32.gmra.mxu0 %v112
    %v131 = vpop.f32.mrf.mxu0
    %v132 = vadd.f32 %v108, %v131
    %133 = vdwg.mxu0
    %v134 = vmax.f32 %v132, 0.0
    %v135 = vld [vmem:[%s4] sm:$0x1]
    %v136 = vld [vmem:[#allocation8] sm:$0xff]
    %v137 = vld [vmem:[#allocation8 + $0x8] sm:$0xff]
    %v138 = vld [vmem:[#allocation8 + $0x10] sm:$0xff]
    %v139 = vld [vmem:[#allocation8 + $0x18] sm:$0xff]
    %v140 = vld [vmem:[#allocation8 + $0x20] sm:$0xff]
    %v141 = vld [vmem:[#allocation8 + $0x28] sm:$0xff]
    %v142 = vld [vmem:[#allocation8 + $0x30] sm:$0xff]
    %v143 = vld [vmem:[#allocation8 + $0x38] sm:$0xff]
    %v144 = vld [vmem:[#allocation8 + $0x40] sm:$0xff]
    %v145 = vld [vmem:[#allocation8 + $0x48] sm:$0xff]
    %v146 = vld [vmem:[#allocation8 + $0x50] sm:$0xff]
    %v147 = vld [vmem:[#allocation8 + $0x58] sm:$0xff]
    %v148 = vld [vmem:[#allocation8 + $0x60] sm:$0xff]
    %v149 = vld [vmem:[#allocation8 + $0x68] sm:$0xff]
    %v150 = vld [vmem:[#allocation8 + $0x70] sm:$0xff]
    %v151 = vld [vmem:[#allocation8 + $0x78] sm:$0xff]
    %v153 = vperm.slane %v135, 0
    %155 = vmatpush.msra.mxu0 %v151
    %156 = vmatpush.msra.mxu0 %v150
    %157 = vmatpush.msra.mxu0 %v149
    %158 = vmatpush.msra.mxu0 %v148
    %159 = vmatpush.msra.mxu0 %v147
    %160 = vmatpush.msra.mxu0 %v146
    %161 = vmatpush.msra.mxu0 %v145
    %162 = vmatpush.msra.mxu0 %v144
    %163 = vmatpush.msra.mxu0 %v143
    %164 = vmatpush.msra.mxu0 %v142
    %165 = vmatpush.msra.mxu0 %v141
    %166 = vmatpush.msra.mxu0 %v140
    %167 = vmatpush.msra.mxu0 %v139
    %168 = vmatpush.msra.mxu0 %v138
    %169 = vmatpush.msra.mxu0 %v137
    %170 = vmatpush.msra.mxu0 %v136
    %171 = vmatmul.f32.gmra.mxu0 %v134
    %v172 = vpop.f32.mrf.mxu0
    %v173 = vadd.f32 %v153, %v172
    %174 = vdwg.mxu0
    %v175 = vmax.f32 %v173, 0.0
    %v176 = vld [vmem:[%s6] sm:$0x1]
    %v177 = vld [vmem:[#allocation10] sm:$0xff]
    %v178 = vld [vmem:[#allocation10 + $0x8] sm:$0xff]
    %v179 = vld [vmem:[#allocation10 + $0x10] sm:$0xff]
    %v180 = vld [vmem:[#allocation10 + $0x18] sm:$0xff]
    %v181 = vld [vmem:[#allocation10 + $0x20] sm:$0xff]
    %v182 = vld [vmem:[#allocation10 + $0x28] sm:$0xff]
    %v183 = vld [vmem:[#allocation10 + $0x30] sm:$0xff]
    %v184 = vld [vmem:[#allocation10 + $0x38] sm:$0xff]
    %v185 = vld [vmem:[#allocation10 + $0x40] sm:$0xff]
    %v186 = vld [vmem:[#allocation10 + $0x48] sm:$0xff]
    %v187 = vld [vmem:[#allocation10 + $0x50] sm:$0xff]
    %v188 = vld [vmem:[#allocation10 + $0x58] sm:$0xff]
    %v189 = vld [vmem:[#allocation10 + $0x60] sm:$0xff]
    %v190 = vld [vmem:[#allocation10 + $0x68] sm:$0xff]
    %v191 = vld [vmem:[#allocation10 + $0x70] sm:$0xff]
    %v192 = vld [vmem:[#allocation10 + $0x78] sm:$0xff]
    %v194 = vperm.slane %v176, 0
    %196 = vmatpush.msra.mxu0 %v192
    %197 = vmatpush.msra.mxu0 %v191
    %198 = vmatpush.msra.mxu0 %v190
    %199 = vmatpush.msra.mxu0 %v189
    %200 = vmatpush.msra.mxu0 %v188
    %201 = vmatpush.msra.mxu0 %v187
    %202 = vmatpush.msra.mxu0 %v186
    %203 = vmatpush.msra.mxu0 %v185
    %204 = vmatpush.msra.mxu0 %v184
    %205 = vmatpush.msra.mxu0 %v183
    %206 = vmatpush.msra.mxu0 %v182
    %207 = vmatpush.msra.mxu0 %v181
    %208 = vmatpush.msra.mxu0 %v180
    %209 = vmatpush.msra.mxu0 %v179
    %210 = vmatpush.msra.mxu0 %v178
    %211 = vmatpush.msra.mxu0 %v177
    %212 = vmatmul.f32.gmra.mxu0 %v175
    %v213 = vpop.f32.mrf.mxu0
    %v214 = vadd.f32 %v194, %v213
    %215 = vdwg.mxu0
    %216 = vst [vmem:[#allocation11] sm:$0xff] %v214
    // Predicated region
    $region50: #{mlp_forward.1} parent=1 // pred_check
      _
    $region51: #{mlp_forward.1} parent=1 // pred_check_branch
      %218 = sbr.rel (0) target = $region53
    $region52: #{mlp_forward.1} parent=1 // pred_region
      %220 = vsyncadd [#allocation4], 0
      %s222 = sshll.u32 [#allocation11], 4
      %s223 = int_to_ptr.vmem [resolvable:$true] %s222
      %s224 = sshll.u32 %s7, 4
      %s225 = int_to_ptr.hbm [resolvable:$true] %s224
      %227 = dma.vmem_to_hbm [thread:$0]  %s223, 128, %s225, [#allocation4]
    $region53: #{mlp_forward.1} parent=1 // pred_fallthru
      _
    // Predicated region
    $region54: #{mlp_forward.1} parent=1 // pred_check
      _
    $region55: #{mlp_forward.1} parent=1 // pred_check_branch
      %229 = sbr.rel (0) target = $region57
    $region56: #{mlp_forward.1} parent=1 // pred_region
      %231 = dma.done [#allocation4], 128
    $region57: #{mlp_forward.1} parent=1 // pred_fallthru
      _
    %232 = vsyncpa [#allocation3], 1
    %233 = vsyncpa [#allocation6], 1
    %234 = vsyncpa [#allocation9], 1
    %235 = vsyncpa [#allocation4], 1

</llo_original>
